<compile_context>
chip_gen: v7x
topology: tpu7x:2x2x1
jax: 0.10.0
libtpu: 0.0.40
codegen_flags: <defaults>
</compile_context>

<pallas_src>
import functools

import numpy as np
import jax
import jax.numpy as jnp
from jax import lax
from jax.experimental import pallas as pl
from jax.experimental.pallas import tpu as pltpu


# ------------------------------ Pallas kernel --------------------------------

def _gaussian_ffn_kernel(x_ref, g_ref, b_ref, w1_ref, b1_ref, w2_ref, b2_ref,
                         o_ref, *, normalize, eps):
    """Fused (optional LayerNorm) -> Linear -> GELU(tanh) -> Linear.

    x_ref : (block_m, d_model)      tile of tokens
    g_ref, b_ref : (1, d_model)     LayerNorm gamma/beta (unused if !normalize)
    w1_ref: (d_model, d_ffn), b1_ref: (1, d_ffn)
    w2_ref: (d_ffn, d_model), b2_ref: (1, d_model)
    o_ref : (block_m, d_model)
    """
    x = x_ref[...]

    if normalize:  # static flag -> branch resolved at trace time
        mu = jnp.mean(x, axis=-1, keepdims=True)
        xc = x - mu
        var = jnp.mean(xc * xc, axis=-1, keepdims=True)
        x = xc * lax.rsqrt(var + eps)
        x = x * g_ref[...] + b_ref[...]

    # Linear 1 (MXU, f32 accumulate) + bias
    h = jnp.dot(x, w1_ref[...], preferred_element_type=jnp.float32) + b1_ref[...]

    # GELU, tanh approximation (matches nn.GELU(approximate='tanh')):
    #   0.5 * h * (1 + tanh(sqrt(2/pi) * (h + 0.044715 * h^3)))
    c = 0.7978845608028654  # sqrt(2/pi)
    h = 0.5 * h * (1.0 + jnp.tanh(c * (h + 0.044715 * h * h * h)))

    # Linear 2 (MXU) + bias
    y = jnp.dot(h, w2_ref[...], preferred_element_type=jnp.float32) + b2_ref[...]
    o_ref[...] = y.astype(o_ref.dtype)


# -------------------------------- wrapper -------------------------------------

def gaussian_ffn_forward(x, params, *, normalize=False, block_m=64, eps=1e-5):
    """x: (..., model_dim) -> (..., model_dim)."""
    orig_shape = x.shape
    d_model = orig_shape[-1]
    d_ffn = params["w1"].shape[1]

    x2 = x.reshape(-1, d_model).astype(jnp.float32)
    m = x2.shape[0]
    m_pad = pl.cdiv(m, block_m) * block_m
    if m_pad != m:
        x2 = jnp.pad(x2, ((0, m_pad - m), (0, 0)))

    gamma = params["ln_gamma"].reshape(1, d_model)
    beta = params["ln_beta"].reshape(1, d_model)
    b1 = params["b1"].reshape(1, d_ffn)
    b2 = params["b2"].reshape(1, d_model)

    grid = (m_pad // block_m,)
    out = pl.pallas_call(
        functools.partial(_gaussian_ffn_kernel, normalize=normalize, eps=eps),
        grid=grid,
        in_specs=[
            pl.BlockSpec((block_m, d_model), lambda i: (i, 0)),   # x tile
            pl.BlockSpec((1, d_model), lambda i: (0, 0)),         # ln gamma
            pl.BlockSpec((1, d_model), lambda i: (0, 0)),         # ln beta
            pl.BlockSpec((d_model, d_ffn), lambda i: (0, 0)),     # w1 (resident)
            pl.BlockSpec((1, d_ffn), lambda i: (0, 0)),           # b1
            pl.BlockSpec((d_ffn, d_model), lambda i: (0, 0)),     # w2 (resident)
            pl.BlockSpec((1, d_model), lambda i: (0, 0)),         # b2
        ],
        out_specs=pl.BlockSpec((block_m, d_model), lambda i: (i, 0)),
        out_shape=jax.ShapeDtypeStruct((m_pad, d_model), jnp.float32),
        compiler_params=pltpu.CompilerParams(
            dimension_semantics=("parallel",),      # megacore-shard token blocks
            vmem_limit_bytes=32 * 1024 * 1024,      # safe on v7x (64 MiB phys)
        ),
    )(x2, gamma, beta, params["w1"], b1, params["w2"], b2)

    if m_pad != m:
        out = out[:m]
    return out.reshape(orig_shape)


# --------------------------- params / reference -------------------------------

def make_params(key, model_dim, ffn_dim):
    k1, k2, k3, k4, k5, k6 = jax.random.split(key, 6)
    p = {}
    p["ln_gamma"] = 1.0 + 0.05 * jax.random.normal(k1, (model_dim,), jnp.float32)
    p["ln_beta"] = 0.05 * jax.random.normal(k2, (model_dim,), jnp.float32)
    p["w1"] = jax.random.normal(k3, (model_dim, ffn_dim), jnp.float32) / np.sqrt(model_dim)
    p["b1"] = 0.05 * jax.random.normal(k4, (ffn_dim,), jnp.float32)
    p["w2"] = jax.random.normal(k5, (ffn_dim, model_dim), jnp.float32) / np.sqrt(ffn_dim)
    p["b2"] = 0.05 * jax.random.normal(k6, (model_dim,), jnp.float32)
    return p


def reference_forward(x, params, *, normalize=False, eps=1e-5):
    """Pure-JAX reference with identical semantics to the PyTorch module."""
    h = x.astype(jnp.float32)
    if normalize:
        mu = jnp.mean(h, axis=-1, keepdims=True)
        var = jnp.mean((h - mu) ** 2, axis=-1, keepdims=True)
        h = (h - mu) / jnp.sqrt(var + eps)
        h = h * params["ln_gamma"] + params["ln_beta"]
    h = h @ params["w1"] + params["b1"]
    h = 0.5 * h * (1.0 + jnp.tanh(0.7978845608028654 * (h + 0.044715 * h ** 3)))
    return h @ params["w2"] + params["b2"]


# ---------------------------------- main ---------------------------------------

if __name__ == "__main__":
    model_dim, ffn_dim = 128, 512          # lane-dense (multiples of 128)
    batch, seq = 2, 64

    key = jax.random.PRNGKey(0)
    kx, kp = jax.random.split(key)
    x = jax.random.normal(kx, (batch, seq, model_dim), jnp.float32)
    params = make_params(kp, model_dim, ffn_dim)

    # normalize=False (module default: Identity in place of LayerNorm)
    out = gaussian_ffn_forward(x, params, normalize=False)
    out = jax.block_until_ready(out)
    ref = reference_forward(x, params, normalize=False)
    assert out.shape == (batch, seq, model_dim), out.shape
    np.testing.assert_allclose(np.asarray(out), np.asarray(ref), rtol=2e-2, atol=2e-2)

    # normalize=True path (LayerNorm enabled)
    out_ln = gaussian_ffn_forward(x, params, normalize=True)
    out_ln = jax.block_until_ready(out_ln)
    ref_ln = reference_forward(x, params, normalize=True)
    np.testing.assert_allclose(np.asarray(out_ln), np.asarray(ref_ln), rtol=2e-2, atol=2e-2)

    print("KERNEL_OK")
</pallas_src>

<mosaic_0001>
module attributes {stable_mosaic.version = 11 : i64} {
  func.func @_gaussian_ffn_kernel(%arg0: i32, %arg1: memref<64x128xf32, #tpu.memory_space<vmem>>, %arg2: memref<1x128xf32, #tpu.memory_space<vmem>>, %arg3: memref<1x128xf32, #tpu.memory_space<vmem>>, %arg4: memref<128x512xf32, #tpu.memory_space<vmem>>, %arg5: memref<1x512xf32, #tpu.memory_space<vmem>>, %arg6: memref<512x128xf32, #tpu.memory_space<vmem>>, %arg7: memref<1x128xf32, #tpu.memory_space<vmem>>, %arg8: memref<64x128xf32, #tpu.memory_space<vmem>>) attributes {dimension_semantics = [#tpu.dimension_semantics<parallel>], iteration_bounds = array<i64: 2>, scalar_prefetch = 0 : i64, scratch_operands = 0 : i64, tpu.core_type = #tpu.core_type<tc>, window_params = [{transform_indices = @transform_0, window_bounds = array<i64: 64, 128>}, {pipeline_mode = #tpu.pipeline_mode<synchronous>, transform_indices = @transform_1, window_bounds = array<i64: 1, 128>}, {pipeline_mode = #tpu.pipeline_mode<synchronous>, transform_indices = @transform_2, window_bounds = array<i64: 1, 128>}, {pipeline_mode = #tpu.pipeline_mode<synchronous>, transform_indices = @transform_3, window_bounds = array<i64: 128, 512>}, {pipeline_mode = #tpu.pipeline_mode<synchronous>, transform_indices = @transform_4, window_bounds = array<i64: 1, 512>}, {pipeline_mode = #tpu.pipeline_mode<synchronous>, transform_indices = @transform_5, window_bounds = array<i64: 512, 128>}, {pipeline_mode = #tpu.pipeline_mode<synchronous>, transform_indices = @transform_6, window_bounds = array<i64: 1, 128>}, {transform_indices = @transform_7, window_bounds = array<i64: 64, 128>}]} {
    %c0 = arith.constant 0 : index
    %c0_0 = arith.constant 0 : index
    %0 = vector.load %arg1[%c0, %c0_0] : memref<64x128xf32, #tpu.memory_space<vmem>>, vector<64x128xf32>
    %c0_1 = arith.constant 0 : index
    %c0_2 = arith.constant 0 : index
    %1 = vector.load %arg4[%c0_1, %c0_2] : memref<128x512xf32, #tpu.memory_space<vmem>>, vector<128x512xf32>
    %cst = arith.constant dense<0.000000e+00> : vector<64x512xf32>
    %2 = tpu.matmul %0, %1, %cst {dimension_numbers = #tpu.dot_dimension_numbers<[1], [0], [0], [1], [0, 0, 1, 1], [], []>} : vector<64x128xf32>, vector<128x512xf32>, vector<64x512xf32> -> vector<64x512xf32>
    %c0_3 = arith.constant 0 : index
    %c0_4 = arith.constant 0 : index
    %3 = vector.load %arg5[%c0_3, %c0_4] : memref<1x512xf32, #tpu.memory_space<vmem>>, vector<1x512xf32>
    %4 = vector.broadcast %3 : vector<1x512xf32> to vector<64x512xf32>
    %5 = arith.addf %2, %4 : vector<64x512xf32>
    %cst_5 = arith.constant 5.000000e-01 : f32
    %6 = vector.broadcast %cst_5 : f32 to vector<64x512xf32>
    %7 = arith.mulf %6, %5 : vector<64x512xf32>
    %cst_6 = arith.constant 4.471500e-02 : f32
    %8 = vector.broadcast %cst_6 : f32 to vector<64x512xf32>
    %9 = arith.mulf %8, %5 : vector<64x512xf32>
    %10 = arith.mulf %9, %5 : vector<64x512xf32>
    %11 = arith.mulf %10, %5 : vector<64x512xf32>
    %12 = arith.addf %5, %11 : vector<64x512xf32>
    %cst_7 = arith.constant 0.797884583 : f32
    %13 = vector.broadcast %cst_7 : f32 to vector<64x512xf32>
    %14 = arith.mulf %13, %12 : vector<64x512xf32>
    %15 = math.tanh %14 : vector<64x512xf32>
    %cst_8 = arith.constant 1.000000e+00 : f32
    %16 = vector.broadcast %cst_8 : f32 to vector<64x512xf32>
    %17 = arith.addf %16, %15 : vector<64x512xf32>
    %18 = arith.mulf %7, %17 : vector<64x512xf32>
    %c0_9 = arith.constant 0 : index
    %c0_10 = arith.constant 0 : index
    %19 = vector.load %arg6[%c0_9, %c0_10] : memref<512x128xf32, #tpu.memory_space<vmem>>, vector<512x128xf32>
    %cst_11 = arith.constant dense<0.000000e+00> : vector<64x128xf32>
    %20 = tpu.matmul %18, %19, %cst_11 {dimension_numbers = #tpu.dot_dimension_numbers<[1], [0], [0], [1], [0, 0, 1, 1], [], []>} : vector<64x512xf32>, vector<512x128xf32>, vector<64x128xf32> -> vector<64x128xf32>
    %c0_12 = arith.constant 0 : index
    %c0_13 = arith.constant 0 : index
    %21 = vector.load %arg7[%c0_12, %c0_13] : memref<1x128xf32, #tpu.memory_space<vmem>>, vector<1x128xf32>
    %22 = vector.broadcast %21 : vector<1x128xf32> to vector<64x128xf32>
    %23 = arith.addf %20, %22 : vector<64x128xf32>
    %c0_14 = arith.constant 0 : index
    %c0_15 = arith.constant 0 : index
    %24 = vector.load %arg8[%c0_14, %c0_15] : memref<64x128xf32, #tpu.memory_space<vmem>>, vector<64x128xf32>
    tpu.vector_store %arg8[%c0_14, %c0_15], %23 {strides = array<i32>} : memref<64x128xf32, #tpu.memory_space<vmem>>, vector<64x128xf32>,
    return
  }
  func.func @transform_0(%arg0: i32) -> (i32, i32) {
    %c0_i32 = arith.constant 0 : i32
    %c0_i32_0 = arith.constant 0 : i32
    return %arg0, %c0_i32 : i32, i32
  }
  func.func @transform_1(%arg0: i32) -> (i32, i32) {
    %c0_i32 = arith.constant 0 : i32
    %c0_i32_0 = arith.constant 0 : i32
    %c0_i32_1 = arith.constant 0 : i32
    return %c0_i32, %c0_i32_0 : i32, i32
  }
  func.func @transform_2(%arg0: i32) -> (i32, i32) {
    %c0_i32 = arith.constant 0 : i32
    %c0_i32_0 = arith.constant 0 : i32
    %c0_i32_1 = arith.constant 0 : i32
    return %c0_i32, %c0_i32_0 : i32, i32
  }
  func.func @transform_3(%arg0: i32) -> (i32, i32) {
    %c0_i32 = arith.constant 0 : i32
    %c0_i32_0 = arith.constant 0 : i32
    %c0_i32_1 = arith.constant 0 : i32
    return %c0_i32, %c0_i32_0 : i32, i32
  }
  func.func @transform_4(%arg0: i32) -> (i32, i32) {
    %c0_i32 = arith.constant 0 : i32
    %c0_i32_0 = arith.constant 0 : i32
    %c0_i32_1 = arith.constant 0 : i32
    return %c0_i32, %c0_i32_0 : i32, i32
  }
  func.func @transform_5(%arg0: i32) -> (i32, i32) {
    %c0_i32 = arith.constant 0 : i32
    %c0_i32_0 = arith.constant 0 : i32
    %c0_i32_1 = arith.constant 0 : i32
    return %c0_i32, %c0_i32_0 : i32, i32
  }
  func.func @transform_6(%arg0: i32) -> (i32, i32) {
    %c0_i32 = arith.constant 0 : i32
    %c0_i32_0 = arith.constant 0 : i32
    %c0_i32_1 = arith.constant 0 : i32
    return %c0_i32, %c0_i32_0 : i32, i32
  }
  func.func @transform_7(%arg0: i32) -> (i32, i32) {
    %c0_i32 = arith.constant 0 : i32
    %c0_i32_0 = arith.constant 0 : i32
    return %arg0, %c0_i32 : i32, i32
  }
}

</mosaic_0001>

<llo_original>
// kernel: tpu_custom_call.1
$region0: #{tpu_custom_call.1}
  #allocation0 [shape = 'u32[]', space=smem, size = 0x4, offset = 0x4, fixed_abs, tag = 'smem constant byte address 0x4 - core index']
  #allocation1 [shape = 'u32[144,128]{1,0:T(1,128)}', space=vmem, size = 0x12000, scoped, tag = 'internal scratch']
  %s0 = inlined_call_operand.hbm [shape: f32[128,128], index: 0, kind: input, shape index: {}]
  %s1 = inlined_call_operand.vmem [shape: f32[1,128], index: 1, kind: input, shape index: {}]
  %s2 = inlined_call_operand.vmem [shape: f32[1,128], index: 2, kind: input, shape index: {}]
  %s3 = inlined_call_operand.hbm [shape: f32[128,512], index: 3, kind: input, shape index: {}]
  %s4 = inlined_call_operand.vmem [shape: f32[1,512], index: 4, kind: input, shape index: {}]
  %s5 = inlined_call_operand.hbm [shape: f32[512,128], index: 5, kind: input, shape index: {}]
  %s6 = inlined_call_operand.vmem [shape: f32[1,128], index: 6, kind: input, shape index: {}]
  %s7 = inlined_call_operand.hbm [shape: f32[128,128], index: 7, kind: output, shape index: {}]
  %s8 = sld [smem:[#allocation0]]
  $region73: #{tpu_custom_call.1} parent=0
    _
  %s10 = ssub.s32 1, %s8
  %s11 = scalar_select 0, %s10, %s8
  $region1: #{tpu_custom_call.1} parent=0
    #allocation2 [shape = 'u8[65536]{0}', space=vmem, size = 0x10000, scoped, tag = 'input window, operand 0']
    #allocation3 [shape = 's32[2]{0}', space=sflag, size = 0x8, scoped, tag = 'scoped memory for tpu_custom_call.1']
    #allocation4 [shape = 's32[2]{0}', space=sflag, size = 0x8, scoped, tag = 'scoped memory for tpu_custom_call.1']
    #allocation5 [shape = 'u8[262144]{0}', space=vmem, size = 0x40000, scoped, tag = 'input window, operand 3, single buffered']
    #allocation6 [shape = 's32[1]{0}', space=sflag, size = 0x4, scoped, tag = 'scoped memory for tpu_custom_call.1']
    #allocation7 [shape = 'u8[262144]{0}', space=vmem, size = 0x40000, scoped, tag = 'input window, operand 5, single buffered']
    #allocation8 [shape = 'u8[65536]{0}', space=vmem, size = 0x10000, scoped, tag = 'output window, operand 0']
    %12 = vsyncpa [#allocation3], 0
    %s13 = scalar_lea.sflag [#allocation3], 1
    %14 = vsyncpa %s13, 0
    %15 = vsyncpa [#allocation6], 0
    %16 = vsyncpa [#allocation4], 0
    %s17 = scalar_lea.sflag [#allocation4], 1
    %18 = vsyncpa %s17, 0
    loop: start=0, step=1, limit=4
    $region2: #{tpu_custom_call.1} parent=1 // loop_pre_header
      _
    $region3: #{tpu_custom_call.1} parent=1 // loop_header
      %s20 = sphi 0, %s24
      %p21 = scmp.ge.s32.totalorder %s20, 4
      %s30 = sphi 0, %s32
      %s33 = sphi 0, %s30
      %s34 = sphi 0, %s33
      %s50 = sphi 0, %s34
      %s54 = sphi 0, %s54
      %s56 = sphi 0, %s54
      %s57 = sphi 0, %s56
      %s71 = sphi 0, %s57
      %s75 = sphi 0, %s75
      %s77 = sphi 0, %s75
      %s78 = sphi 0, %s77
      %s92 = sphi 0, %s78
      %s96 = sphi 0, %s96
      %s98 = sphi 0, %s96
      %s99 = sphi 0, %s98
      %s113 = sphi 0, %s99
      %s117 = sphi 0, %s117
      %s119 = sphi 0, %s117
      %s120 = sphi 0, %s119
      %s134 = sphi 0, %s120
      %s138 = sphi 0, %s138
      %s140 = sphi 0, %s138
      %s141 = sphi 0, %s140
      %s155 = sphi 0, %s141
      %s159 = sphi 0, %s159
      %s161 = sphi 0, %s159
      %s162 = sphi 0, %s161
      %s176 = sphi 0, %s162
      %s182 = sphi 0, %s184
      %s185 = sphi 0, %s182
      %s186 = sphi 0, %s185
      %s202 = sphi 0, %s186
    $region4: #{tpu_custom_call.1} parent=1 // loop_header_branch
      %23 = sbr.rel (%p21) target = $region8
    $region5: #{tpu_custom_call.1} parent=1 // loop_body
      %s25 = ssub.s32 %s20, 1
      %s26 = ssub.s32 %s20, 2
      %s27 = sadd.s32 %s20, 1
      %s28 = ssub.s32 %s20, %s27
      %p29 = scmp.eq.s32.totalorder %s28, 0
      %s31 = sadd.s32 %s30, 1
      %s32 = scalar_select %p29, %s30, %s31
      %p35 = pneg %p29
      %p36 = scmp.eq.s32.totalorder %s20, 1
      %p37 = por %p35, %p36
      %p38 = scmp.ne.s32.totalorder %s30, %s33
      %p39 = scmp.eq.s32.totalorder %s20, 0
      %p40 = por %p38, %p39
      %p41 = scmp.ne.s32.totalorder %s30, %s33
      %p42 = scmp.eq.s32.totalorder %s25, 1
      %p43 = por %p41, %p42
      %p44 = scmp.ne.s32.totalorder %s33, %s34
      %p45 = scmp.eq.s32.totalorder %s25, 0
      %p46 = por %p44, %p45
      %p47 = scmp.ne.s32.totalorder %s33, %s34
      %p48 = scmp.eq.s32.totalorder %s26, 1
      %p49 = por %p47, %p48
      %p51 = scmp.ne.s32.totalorder %s34, %s50
      %p52 = scmp.eq.s32.totalorder %s26, 0
      %p53 = por %p51, %p52
      %s55 = sadd.s32 %s54, 1
      %p58 = scmp.eq.s32.totalorder %s20, 1
      %p59 = scmp.ne.s32.totalorder %s54, %s56
      %p60 = scmp.eq.s32.totalorder %s20, 0
      %p61 = por %p59, %p60
      %p62 = scmp.ne.s32.totalorder %s54, %s56
      %p63 = scmp.eq.s32.totalorder %s25, 1
      %p64 = por %p62, %p63
      %p65 = scmp.ne.s32.totalorder %s56, %s57
      %p66 = scmp.eq.s32.totalorder %s25, 0
      %p67 = por %p65, %p66
      %p68 = scmp.ne.s32.totalorder %s56, %s57
      %p69 = scmp.eq.s32.totalorder %s26, 1
      %p70 = por %p68, %p69
      %p72 = scmp.ne.s32.totalorder %s57, %s71
      %p73 = scmp.eq.s32.totalorder %s26, 0
      %p74 = por %p72, %p73
      %s76 = sadd.s32 %s75, 1
      %p79 = scmp.eq.s32.totalorder %s20, 1
      %p80 = scmp.ne.s32.totalorder %s75, %s77
      %p81 = scmp.eq.s32.totalorder %s20, 0
      %p82 = por %p80, %p81
      %p83 = scmp.ne.s32.totalorder %s75, %s77
      %p84 = scmp.eq.s32.totalorder %s25, 1
      %p85 = por %p83, %p84
      %p86 = scmp.ne.s32.totalorder %s77, %s78
      %p87 = scmp.eq.s32.totalorder %s25, 0
      %p88 = por %p86, %p87
      %p89 = scmp.ne.s32.totalorder %s77, %s78
      %p90 = scmp.eq.s32.totalorder %s26, 1
      %p91 = por %p89, %p90
      %p93 = scmp.ne.s32.totalorder %s78, %s92
      %p94 = scmp.eq.s32.totalorder %s26, 0
      %p95 = por %p93, %p94
      %s97 = sadd.s32 %s96, 1
      %p100 = scmp.eq.s32.totalorder %s20, 1
      %p101 = scmp.ne.s32.totalorder %s96, %s98
      %p102 = scmp.eq.s32.totalorder %s20, 0
      %p103 = por %p101, %p102
      %p104 = scmp.ne.s32.totalorder %s96, %s98
      %p105 = scmp.eq.s32.totalorder %s25, 1
      %p106 = por %p104, %p105
      %p107 = scmp.ne.s32.totalorder %s98, %s99
      %p108 = scmp.eq.s32.totalorder %s25, 0
      %p109 = por %p107, %p108
      %p110 = scmp.ne.s32.totalorder %s98, %s99
      %p111 = scmp.eq.s32.totalorder %s26, 1
      %p112 = por %p110, %p111
      %p114 = scmp.ne.s32.totalorder %s99, %s113
      %p115 = scmp.eq.s32.totalorder %s26, 0
      %p116 = por %p114, %p115
      %s118 = sadd.s32 %s117, 1
      %p121 = scmp.eq.s32.totalorder %s20, 1
      %p122 = scmp.ne.s32.totalorder %s117, %s119
      %p123 = scmp.eq.s32.totalorder %s20, 0
      %p124 = por %p122, %p123
      %p125 = scmp.ne.s32.totalorder %s117, %s119
      %p126 = scmp.eq.s32.totalorder %s25, 1
      %p127 = por %p125, %p126
      %p128 = scmp.ne.s32.totalorder %s119, %s120
      %p129 = scmp.eq.s32.totalorder %s25, 0
      %p130 = por %p128, %p129
      %p131 = scmp.ne.s32.totalorder %s119, %s120
      %p132 = scmp.eq.s32.totalorder %s26, 1
      %p133 = por %p131, %p132
      %p135 = scmp.ne.s32.totalorder %s120, %s134
      %p136 = scmp.eq.s32.totalorder %s26, 0
      %p137 = por %p135, %p136
      %s139 = sadd.s32 %s138, 1
      %p142 = scmp.eq.s32.totalorder %s20, 1
      %p143 = scmp.ne.s32.totalorder %s138, %s140
      %p144 = scmp.eq.s32.totalorder %s20, 0
      %p145 = por %p143, %p144
      %p146 = scmp.ne.s32.totalorder %s138, %s140
      %p147 = scmp.eq.s32.totalorder %s25, 1
      %p148 = por %p146, %p147
      %p149 = scmp.ne.s32.totalorder %s140, %s141
      %p150 = scmp.eq.s32.totalorder %s25, 0
      %p151 = por %p149, %p150
      %p152 = scmp.ne.s32.totalorder %s140, %s141
      %p153 = scmp.eq.s32.totalorder %s26, 1
      %p154 = por %p152, %p153
      %p156 = scmp.ne.s32.totalorder %s141, %s155
      %p157 = scmp.eq.s32.totalorder %s26, 0
      %p158 = por %p156, %p157
      %s160 = sadd.s32 %s159, 1
      %p163 = scmp.eq.s32.totalorder %s20, 1
      %p164 = scmp.ne.s32.totalorder %s159, %s161
      %p165 = scmp.eq.s32.totalorder %s20, 0
      %p166 = por %p164, %p165
      %p167 = scmp.ne.s32.totalorder %s159, %s161
      %p168 = scmp.eq.s32.totalorder %s25, 1
      %p169 = por %p167, %p168
      %p170 = scmp.ne.s32.totalorder %s161, %s162
      %p171 = scmp.eq.s32.totalorder %s25, 0
      %p172 = por %p170, %p171
      %p173 = scmp.ne.s32.totalorder %s161, %s162
      %p174 = scmp.eq.s32.totalorder %s26, 1
      %p175 = por %p173, %p174
      %p177 = scmp.ne.s32.totalorder %s162, %s176
      %p178 = scmp.eq.s32.totalorder %s26, 0
      %p179 = por %p177, %p178
      %s180 = ssub.s32 %s20, %s27
      %p181 = scmp.eq.s32.totalorder %s180, 0
      %s183 = sadd.s32 %s182, 1
      %s184 = scalar_select %p181, %s182, %s183
      %p187 = pneg %p181
      %p188 = scmp.eq.s32.totalorder %s20, 1
      %p189 = por %p187, %p188
      %p190 = scmp.ne.s32.totalorder %s182, %s185
      %p191 = scmp.eq.s32.totalorder %s20, 0
      %p192 = por %p190, %p191
      %p193 = scmp.ne.s32.totalorder %s182, %s185
      %p194 = scmp.eq.s32.totalorder %s25, 1
      %p195 = por %p193, %p194
      %p196 = scmp.ne.s32.totalorder %s185, %s186
      %p197 = scmp.eq.s32.totalorder %s25, 0
      %p198 = por %p196, %p197
      %p199 = scmp.ne.s32.totalorder %s185, %s186
      %p200 = scmp.eq.s32.totalorder %s26, 1
      %p201 = por %p199, %p200
      %p203 = scmp.ne.s32.totalorder %s186, %s202
      %p204 = scmp.eq.s32.totalorder %s26, 0
      %p205 = por %p203, %p204
      %p206 = scmp.le.s32.totalorder 1, %s20
      %p207 = scmp.lt.s32.totalorder %s20, 3
      %p208 = pnand %p206, %p207
      %p209 = pneg %p208
      // Predicated region
      $region9: #{tpu_custom_call.1} parent=5 // pred_check
        _
      $region10: #{tpu_custom_call.1} parent=5 // pred_check_branch
        %211 = sbr.rel (%p208) target = $region12
      $region11: #{tpu_custom_call.1} parent=5 // pred_region
        %s212 = ssub.s32 %s20, 1
        // Predicated region
        $region13: #{tpu_custom_call.1} parent=11 // pred_check
          %p213 = pneg %p67
        $region14: #{tpu_custom_call.1} parent=11 // pred_check_branch
          %215 = sbr.rel (%p213) target = $region16
        $region15: #{tpu_custom_call.1} parent=11 // pred_region
          _
        $region16: #{tpu_custom_call.1} parent=11 // pred_fallthru
          _
        // Predicated region
        $region17: #{tpu_custom_call.1} parent=11 // pred_check
          %p216 = pneg %p88
        $region18: #{tpu_custom_call.1} parent=11 // pred_check_branch
          %218 = sbr.rel (%p216) target = $region20
        $region19: #{tpu_custom_call.1} parent=11 // pred_region
          _
        $region20: #{tpu_custom_call.1} parent=11 // pred_fallthru
          _
        // Predicated region
        $region21: #{tpu_custom_call.1} parent=11 // pred_check
          %p219 = pneg %p109
        $region22: #{tpu_custom_call.1} parent=11 // pred_check_branch
          %221 = sbr.rel (%p219) target = $region24
        $region23: #{tpu_custom_call.1} parent=11 // pred_region
          %s223 = ssub.s32 8192, 8192
          %224 = vsyncadd [#allocation6], %s223
          %s225 = sshll.u32 [#allocation5], 4
          %s226 = int_to_ptr.vmem [resolvable:$true] %s225
          %231 = dma.hbm_to_vmem [thread:$0]  %s3, 8192, %s226, [#allocation6], 512, 512, 32
        $region24: #{tpu_custom_call.1} parent=11 // pred_fallthru
          _
        // Predicated region
        $region25: #{tpu_custom_call.1} parent=11 // pred_check
          %p232 = pneg %p130
        $region26: #{tpu_custom_call.1} parent=11 // pred_check_branch
          %234 = sbr.rel (%p232) target = $region28
        $region27: #{tpu_custom_call.1} parent=11 // pred_region
          _
        $region28: #{tpu_custom_call.1} parent=11 // pred_fallthru
          _
        // Predicated region
        $region29: #{tpu_custom_call.1} parent=11 // pred_check
          %p235 = pneg %p151
        $region30: #{tpu_custom_call.1} parent=11 // pred_check_branch
          %237 = sbr.rel (%p235) target = $region32
        $region31: #{tpu_custom_call.1} parent=11 // pred_region
          %s239 = ssub.s32 8192, 8192
          %240 = vsyncadd [#allocation6], %s239
          %s241 = sshll.u32 [#allocation7], 4
          %s242 = int_to_ptr.vmem [resolvable:$true] %s241
          %247 = dma.hbm_to_vmem [thread:$0]  %s5, 8192, %s242, [#allocation6], 128, 128, 8
        $region32: #{tpu_custom_call.1} parent=11 // pred_fallthru
          _
        // Predicated region
        $region33: #{tpu_custom_call.1} parent=11 // pred_check
          %p248 = pneg %p172
        $region34: #{tpu_custom_call.1} parent=11 // pred_check_branch
          %250 = sbr.rel (%p248) target = $region36
        $region35: #{tpu_custom_call.1} parent=11 // pred_region
          _
        $region36: #{tpu_custom_call.1} parent=11 // pred_fallthru
          _
      $region12: #{tpu_custom_call.1} parent=5 // pred_fallthru
        _
      %p251 = scmp.lt.s32.totalorder %s20, 2
      // Predicated region
      $region37: #{tpu_custom_call.1} parent=5 // pred_check
        %p252 = pneg %p251
      $region38: #{tpu_custom_call.1} parent=5 // pred_check_branch
        %254 = sbr.rel (%p252) target = $region40
      $region39: #{tpu_custom_call.1} parent=5 // pred_region
        // Predicated region
        $region41: #{tpu_custom_call.1} parent=39 // pred_check
          %p255 = pneg %p40
        $region42: #{tpu_custom_call.1} parent=39 // pred_check_branch
          %257 = sbr.rel (%p255) target = $region44
        $region43: #{tpu_custom_call.1} parent=39 // pred_region
          %s258 = sand.u32 %s30, 1
          %s259 = scalar_lea.sflag [#allocation3], %s258
          %s260 = sand.u32 %s30, 1
          %s261 = smul.addr %s260, 64
          %s262 = scalar_lea.vmem [#allocation2], %s261
          %s263 = smul.u32 8, %s20
          %s265 = ssub.s32 1024, 1024
          %266 = vsyncadd %s259, %s265
          %s267 = smul.addr %s263, 128
          %s268 = scalar_lea.hbm %s0, %s267
          %s269 = sshll.u32 %s262, 4
          %s270 = int_to_ptr.vmem [resolvable:$true] %s269
          %275 = dma.hbm_to_vmem [thread:$0]  %s268, 1024, %s270, %s259, 128, 128, 8
        $region44: #{tpu_custom_call.1} parent=39 // pred_fallthru
          _
      $region40: #{tpu_custom_call.1} parent=5 // pred_fallthru
        _
      %p276 = scmp.le.s32.totalorder 1, %s20
      %p277 = scmp.lt.s32.totalorder %s20, 3
      %p278 = pnand %p276, %p277
      %p279 = pneg %p278
      // Predicated region
      $region45: #{tpu_custom_call.1} parent=5 // pred_check
        _
      $region46: #{tpu_custom_call.1} parent=5 // pred_check_branch
        %281 = sbr.rel (%p278) target = $region48
      $region47: #{tpu_custom_call.1} parent=5 // pred_region
        %s282 = ssub.s32 %s20, 1
        %s283 = sand.u32 %s33, 1
        %s284 = scalar_lea.sflag [#allocation3], %s283
        %s285 = sand.u32 %s33, 1
        %s286 = smul.addr %s285, 64
        %s287 = scalar_lea.vmem [#allocation2], %s286
        // Predicated region
        $region49: #{tpu_custom_call.1} parent=47 // pred_check
          %p288 = pneg %p46
        $region50: #{tpu_custom_call.1} parent=47 // pred_check_branch
          %290 = sbr.rel (%p288) target = $region52
        $region51: #{tpu_custom_call.1} parent=47 // pred_region
          %291 = dma.done %s284, 1024
        $region52: #{tpu_custom_call.1} parent=47 // pred_fallthru
          _
        // Predicated region
        $region53: #{tpu_custom_call.1} parent=47 // pred_check
          %p292 = pneg %p109
        $region54: #{tpu_custom_call.1} parent=47 // pred_check_branch
          %294 = sbr.rel (%p292) target = $region56
        $region55: #{tpu_custom_call.1} parent=47 // pred_region
          %295 = dma.done [#allocation6], 8192
        $region56: #{tpu_custom_call.1} parent=47 // pred_fallthru
          _
        // Predicated region
        $region57: #{tpu_custom_call.1} parent=47 // pred_check
          %p296 = pneg %p151
        $region58: #{tpu_custom_call.1} parent=47 // pred_check_branch
          %298 = sbr.rel (%p296) target = $region60
        $region59: #{tpu_custom_call.1} parent=47 // pred_region
          %299 = dma.done [#allocation6], 8192
        $region60: #{tpu_custom_call.1} parent=47 // pred_fallthru
          _
        %s300 = sand.u32 %s33, 1
        %s301 = scalar_lea.sflag [#allocation3], %s300
        %s302 = sand.u32 %s33, 1
        %s303 = smul.addr %s302, 64
        %s304 = scalar_lea.vmem [#allocation2], %s303
        %p305 = pneg %p46
        %p306 = pneg %p43
        %p307 = pneg %p67
        %p308 = pneg %p64
        %p309 = pneg %p88
        %p310 = pneg %p85
        %p311 = pneg %p109
        %p312 = pneg %p106
        %p313 = pneg %p130
        %p314 = pneg %p127
        %p315 = pneg %p151
        %p316 = pneg %p148
        %p317 = pneg %p172
        %p318 = pneg %p169
        %p319 = pneg %p198
        %p320 = pneg %p195
        %s321 = sand.u32 %s185, 1
        %s322 = scalar_lea.sflag [#allocation4], %s321
        %s323 = sand.u32 %s185, 1
        %s324 = smul.addr %s323, 64
        %s325 = scalar_lea.vmem [#allocation8], %s324
        %s326 = smul.u32 8, %s25
        %s327 = smul.u32 8, %s25
        %v328 = vld [vmem:[%s287] sm:$0xff]
        %v329 = vld [vmem:[%s287 + $0x8] sm:$0xff]
        %v330 = vld [vmem:[%s287 + $0x10] sm:$0xff]
        %v331 = vld [vmem:[%s287 + $0x18] sm:$0xff]
        %v332 = vld [vmem:[%s287 + $0x20] sm:$0xff]
        %v333 = vld [vmem:[%s287 + $0x28] sm:$0xff]
        %v334 = vld [vmem:[%s287 + $0x30] sm:$0xff]
        %v335 = vld [vmem:[%s287 + $0x38] sm:$0xff]
        %v336 = vld [vmem:[#allocation5] sm:$0xff]
        %v337 = vld [vmem:[#allocation5 + $0x8] sm:$0xff]
        %v338 = vld [vmem:[#allocation5 + $0x10] sm:$0xff]
        %v339 = vld [vmem:[#allocation5 + $0x18] sm:$0xff]
        %v340 = vld [vmem:[#allocation5 + $0x20] sm:$0xff]
        %v341 = vld [vmem:[#allocation5 + $0x28] sm:$0xff]
        %v342 = vld [vmem:[#allocation5 + $0x30] sm:$0xff]
        %v343 = vld [vmem:[#allocation5 + $0x38] sm:$0xff]
        %v344 = vld [vmem:[#allocation5 + $0x40] sm:$0xff]
        %v345 = vld [vmem:[#allocation5 + $0x48] sm:$0xff]
        %v346 = vld [vmem:[#allocation5 + $0x50] sm:$0xff]
        %v347 = vld [vmem:[#allocation5 + $0x58] sm:$0xff]
        %v348 = vld [vmem:[#allocation5 + $0x60] sm:$0xff]
        %v349 = vld [vmem:[#allocation5 + $0x68] sm:$0xff]
        %v350 = vld [vmem:[#allocation5 + $0x70] sm:$0xff]
        %v351 = vld [vmem:[#allocation5 + $0x78] sm:$0xff]
        %v352 = vld [vmem:[#allocation5 + $0x80] sm:$0xff]
        %v353 = vld [vmem:[#allocation5 + $0x88] sm:$0xff]
        %v354 = vld [vmem:[#allocation5 + $0x90] sm:$0xff]
        %v355 = vld [vmem:[#allocation5 + $0x98] sm:$0xff]
        %v356 = vld [vmem:[#allocation5 + $0xa0] sm:$0xff]
        %v357 = vld [vmem:[#allocation5 + $0xa8] sm:$0xff]
        %v358 = vld [vmem:[#allocation5 + $0xb0] sm:$0xff]
        %v359 = vld [vmem:[#allocation5 + $0xb8] sm:$0xff]
        %v360 = vld [vmem:[#allocation5 + $0xc0] sm:$0xff]
        %v361 = vld [vmem:[#allocation5 + $0xc8] sm:$0xff]
        %v362 = vld [vmem:[#allocation5 + $0xd0] sm:$0xff]
        %v363 = vld [vmem:[#allocation5 + $0xd8] sm:$0xff]
        %v364 = vld [vmem:[#allocation5 + $0xe0] sm:$0xff]
        %v365 = vld [vmem:[#allocation5 + $0xe8] sm:$0xff]
        %v366 = vld [vmem:[#allocation5 + $0xf0] sm:$0xff]
        %v367 = vld [vmem:[#allocation5 + $0xf8] sm:$0xff]
        %v368 = vld [vmem:[#allocation5 + $0x100] sm:$0xff]
        %v369 = vld [vmem:[#allocation5 + $0x108] sm:$0xff]
        %v370 = vld [vmem:[#allocation5 + $0x110] sm:$0xff]
        %v371 = vld [vmem:[#allocation5 + $0x118] sm:$0xff]
        %v372 = vld [vmem:[#allocation5 + $0x120] sm:$0xff]
        %v373 = vld [vmem:[#allocation5 + $0x128] sm:$0xff]
        %v374 = vld [vmem:[#allocation5 + $0x130] sm:$0xff]
        %v375 = vld [vmem:[#allocation5 + $0x138] sm:$0xff]
        %v376 = vld [vmem:[#allocation5 + $0x140] sm:$0xff]
        %v377 = vld [vmem:[#allocation5 + $0x148] sm:$0xff]
        %v378 = vld [vmem:[#allocation5 + $0x150] sm:$0xff]
        %v379 = vld [vmem:[#allocation5 + $0x158] sm:$0xff]
        %v380 = vld [vmem:[#allocation5 + $0x160] sm:$0xff]
        %v381 = vld [vmem:[#allocation5 + $0x168] sm:$0xff]
        %v382 = vld [vmem:[#allocation5 + $0x170] sm:$0xff]
        %v383 = vld [vmem:[#allocation5 + $0x178] sm:$0xff]
        %v384 = vld [vmem:[#allocation5 + $0x180] sm:$0xff]
        %v385 = vld [vmem:[#allocation5 + $0x188] sm:$0xff]
        %v386 = vld [vmem:[#allocation5 + $0x190] sm:$0xff]
        %v387 = vld [vmem:[#allocation5 + $0x198] sm:$0xff]
        %v388 = vld [vmem:[#allocation5 + $0x1a0] sm:$0xff]
        %v389 = vld [vmem:[#allocation5 + $0x1a8] sm:$0xff]
        %v390 = vld [vmem:[#allocation5 + $0x1b0] sm:$0xff]
        %v391 = vld [vmem:[#allocation5 + $0x1b8] sm:$0xff]
        %v392 = vld [vmem:[#allocation5 + $0x1c0] sm:$0xff]
        %v393 = vld [vmem:[#allocation5 + $0x1c8] sm:$0xff]
        %v394 = vld [vmem:[#allocation5 + $0x1d0] sm:$0xff]
        %v395 = vld [vmem:[#allocation5 + $0x1d8] sm:$0xff]
        %v396 = vld [vmem:[#allocation5 + $0x1e0] sm:$0xff]
        %v397 = vld [vmem:[#allocation5 + $0x1e8] sm:$0xff]
        %v398 = vld [vmem:[#allocation5 + $0x1f0] sm:$0xff]
        %v399 = vld [vmem:[#allocation5 + $0x1f8] sm:$0xff]
        %v400 = vld [vmem:[%s4] sm:$0xf]
        %v402 = vlaneseq
        %v403 = vshrl.u32 %v402, 7
        %v404 = vsub.s32 0, %v403
        %v405 = vrot.slane %v400, %v404
        %v406 = vlaneseq
        %v407 = vshrl.u32 %v406, 7
        %v408 = vsub.s32 1, %v407
        %v409 = vrot.slane %v400, %v408
        %v410 = vlaneseq
        %v411 = vshrl.u32 %v410, 7
        %v412 = vsub.s32 2, %v411
        %v413 = vrot.slane %v400, %v412
        %v414 = vlaneseq
        %v415 = vshrl.u32 %v414, 7
        %v416 = vsub.s32 3, %v415
        %v417 = vrot.slane %v400, %v416
        %422 = vmatprep.subr.mxu0 %v337
        %423 = vmatpush1.msra.mxu0 %v336
        %424 = vmatprep.subr.mxu0 %v341
        %425 = vmatpush1.msra.mxu0 %v340
        %426 = vmatprep.subr.mxu0 %v345
        %427 = vmatpush1.msra.mxu0 %v344
        %428 = vmatprep.subr.mxu0 %v349
        %429 = vmatpush1.msra.mxu0 %v348
        %430 = vmatprep.subr.mxu0 %v353
        %431 = vmatpush1.msra.mxu0 %v352
        %432 = vmatprep.subr.mxu0 %v357
        %433 = vmatpush1.msra.mxu0 %v356
        %434 = vmatprep.subr.mxu0 %v361
        %435 = vmatpush1.msra.mxu0 %v360
        %436 = vmatprep.subr.mxu0 %v365
        %437 = vmatpush1.msra.mxu0 %v364
        %438 = vmatprep.subr.mxu0 %v369
        %439 = vmatpush1.msra.mxu0 %v368
        %440 = vmatprep.subr.mxu0 %v373
        %441 = vmatpush1.msra.mxu0 %v372
        %442 = vmatprep.subr.mxu0 %v377
        %443 = vmatpush1.msra.mxu0 %v376
        %444 = vmatprep.subr.mxu0 %v381
        %445 = vmatpush1.msra.mxu0 %v380
        %446 = vmatprep.subr.mxu0 %v385
        %447 = vmatpush1.msra.mxu0 %v384
        %448 = vmatprep.subr.mxu0 %v389
        %449 = vmatpush1.msra.mxu0 %v388
        %450 = vmatprep.subr.mxu0 %v393
        %451 = vmatpush1.msra.mxu0 %v392
        %452 = vmatprep.subr.mxu0 %v397
        %453 = vmatpush1.msra.mxu0 %v396
        %454 = vmatprep.subr.mxu0 0.0
        %455 = vmatpush1.msra.mxu0 0.0
        %456 = vmatprep.subr.mxu0 0.0
        %457 = vmatpush1.msra.mxu0 0.0
        %458 = vmatprep.subr.mxu0 0.0
        %459 = vmatpush1.msra.mxu0 0.0
        %460 = vmatprep.subr.mxu0 0.0
        %461 = vmatpush1.msra.mxu0 0.0
        %462 = vmatprep.subr.mxu0 0.0
        %463 = vmatpush1.msra.mxu0 0.0
        %464 = vmatprep.subr.mxu0 0.0
        %465 = vmatpush1.msra.mxu0 0.0
        %466 = vmatprep.subr.mxu0 0.0
        %467 = vmatpush1.msra.mxu0 0.0
        %468 = vmatprep.subr.mxu0 0.0
        %469 = vmatpush1.msra.mxu0 0.0
        %470 = vmatprep.subr.mxu0 0.0
        %471 = vmatpush1.msra.mxu0 0.0
        %472 = vmatprep.subr.mxu0 0.0
        %473 = vmatpush1.msra.mxu0 0.0
        %474 = vmatprep.subr.mxu0 0.0
        %475 = vmatpush1.msra.mxu0 0.0
        %476 = vmatprep.subr.mxu0 0.0
        %477 = vmatpush1.msra.mxu0 0.0
        %478 = vmatprep.subr.mxu0 0.0
        %479 = vmatpush1.msra.mxu0 0.0
        %480 = vmatprep.subr.mxu0 0.0
        %481 = vmatpush1.msra.mxu0 0.0
        %482 = vmatprep.subr.mxu0 0.0
        %483 = vmatpush1.msra.mxu0 0.0
        %484 = vmatprep.subr.mxu0 0.0
        %485 = vmatpush1.msra.mxu0 0.0
        %486 = vmatprep.mubr.f32.mxu0 0.0
        %487 = vmatmul.mubr.f32.gmra.mrb[0].mxu0 %v328
        %v488 = vpop.f32.mrb[0].mxu0
        %v489 = vadd.f32 %v405, %v488
        %v490 = vpop.f32.mrb[0].mxu0
        %v491 = vadd.f32 %v409, %v490
        %492 = vmatprep.mubr.f32.mxu0 0.0
        %493 = vmatmul.mubr.f32.gmra.mrb[0].mxu0 %v329
        %v494 = vpop.f32.mrb[0].mxu0
        %v495 = vadd.f32 %v405, %v494
        %v496 = vpop.f32.mrb[0].mxu0
        %v497 = vadd.f32 %v409, %v496
        %498 = vmatprep.mubr.f32.mxu0 0.0
        %499 = vmatmul.mubr.f32.gmra.mrb[0].mxu0 %v330
        %v500 = vpop.f32.mrb[0].mxu0
        %v501 = vadd.f32 %v405, %v500
        %v502 = vpop.f32.mrb[0].mxu0
        %v503 = vadd.f32 %v409, %v502
        %504 = vmatprep.mubr.f32.mxu0 0.0
        %505 = vmatmul.mubr.f32.gmra.mrb[0].mxu0 %v331
        %v506 = vpop.f32.mrb[0].mxu0
        %v507 = vadd.f32 %v405, %v506
        %v508 = vpop.f32.mrb[0].mxu0
        %v509 = vadd.f32 %v409, %v508
        %510 = vmatprep.mubr.f32.mxu0 0.0
        %511 = vmatmul.mubr.f32.gmra.mrb[0].mxu0 %v332
        %v512 = vpop.f32.mrb[0].mxu0
        %v513 = vadd.f32 %v405, %v512
        %v514 = vpop.f32.mrb[0].mxu0
        %v515 = vadd.f32 %v409, %v514
        %516 = vmatprep.mubr.f32.mxu0 0.0
        %517 = vmatmul.mubr.f32.gmra.mrb[0].mxu0 %v333
        %v518 = vpop.f32.mrb[0].mxu0
        %v519 = vadd.f32 %v405, %v518
        %v520 = vpop.f32.mrb[0].mxu0
        %v521 = vadd.f32 %v409, %v520
        %522 = vmatprep.mubr.f32.mxu0 0.0
        %523 = vmatmul.mubr.f32.gmra.mrb[0].mxu0 %v334
        %v524 = vpop.f32.mrb[0].mxu0
        %v525 = vadd.f32 %v405, %v524
        %v526 = vpop.f32.mrb[0].mxu0
        %v527 = vadd.f32 %v409, %v526
        %528 = vmatprep.mubr.f32.mxu0 0.0
        %529 = vmatmul.mubr.f32.gmra.mrb[0].mxu0 %v335
        %v530 = vpop.f32.mrb[0].mxu0
        %v531 = vadd.f32 %v405, %v530
        %v532 = vpop.f32.mrb[0].mxu0
        %v533 = vadd.f32 %v409, %v532
        %534 = vdwg.mxu0
        %535 = vmatprep.subr.mxu0 %v339
        %536 = vmatpush1.msra.mxu0 %v338
        %537 = vmatprep.subr.mxu0 %v343
        %538 = vmatpush1.msra.mxu0 %v342
        %539 = vmatprep.subr.mxu0 %v347
        %540 = vmatpush1.msra.mxu0 %v346
        %541 = vmatprep.subr.mxu0 %v351
        %542 = vmatpush1.msra.mxu0 %v350
        %543 = vmatprep.subr.mxu0 %v355
        %544 = vmatpush1.msra.mxu0 %v354
        %545 = vmatprep.subr.mxu0 %v359
        %546 = vmatpush1.msra.mxu0 %v358
        %547 = vmatprep.subr.mxu0 %v363
        %548 = vmatpush1.msra.mxu0 %v362
        %549 = vmatprep.subr.mxu0 %v367
        %550 = vmatpush1.msra.mxu0 %v366
        %551 = vmatprep.subr.mxu0 %v371
        %552 = vmatpush1.msra.mxu0 %v370
        %553 = vmatprep.subr.mxu0 %v375
        %554 = vmatpush1.msra.mxu0 %v374
        %555 = vmatprep.subr.mxu0 %v379
        %556 = vmatpush1.msra.mxu0 %v378
        %557 = vmatprep.subr.mxu0 %v383
        %558 = vmatpush1.msra.mxu0 %v382
        %559 = vmatprep.subr.mxu0 %v387
        %560 = vmatpush1.msra.mxu0 %v386
        %561 = vmatprep.subr.mxu0 %v391
        %562 = vmatpush1.msra.mxu0 %v390
        %563 = vmatprep.subr.mxu0 %v395
        %564 = vmatpush1.msra.mxu0 %v394
        %565 = vmatprep.subr.mxu0 %v399
        %566 = vmatpush1.msra.mxu0 %v398
        %567 = vmatprep.subr.mxu0 0.0
        %568 = vmatpush1.msra.mxu0 0.0
        %569 = vmatprep.subr.mxu0 0.0
        %570 = vmatpush1.msra.mxu0 0.0
        %571 = vmatprep.subr.mxu0 0.0
        %572 = vmatpush1.msra.mxu0 0.0
        %573 = vmatprep.subr.mxu0 0.0
        %574 = vmatpush1.msra.mxu0 0.0
        %575 = vmatprep.subr.mxu0 0.0
        %576 = vmatpush1.msra.mxu0 0.0
        %577 = vmatprep.subr.mxu0 0.0
        %578 = vmatpush1.msra.mxu0 0.0
        %579 = vmatprep.subr.mxu0 0.0
        %580 = vmatpush1.msra.mxu0 0.0
        %581 = vmatprep.subr.mxu0 0.0
        %582 = vmatpush1.msra.mxu0 0.0
        %583 = vmatprep.subr.mxu0 0.0
        %584 = vmatpush1.msra.mxu0 0.0
        %585 = vmatprep.subr.mxu0 0.0
        %586 = vmatpush1.msra.mxu0 0.0
        %587 = vmatprep.subr.mxu0 0.0
        %588 = vmatpush1.msra.mxu0 0.0
        %589 = vmatprep.subr.mxu0 0.0
        %590 = vmatpush1.msra.mxu0 0.0
        %591 = vmatprep.subr.mxu0 0.0
        %592 = vmatpush1.msra.mxu0 0.0
        %593 = vmatprep.subr.mxu0 0.0
        %594 = vmatpush1.msra.mxu0 0.0
        %595 = vmatprep.subr.mxu0 0.0
        %596 = vmatpush1.msra.mxu0 0.0
        %597 = vmatprep.subr.mxu0 0.0
        %598 = vmatpush1.msra.mxu0 0.0
        %599 = vmatprep.mubr.f32.mxu0 0.0
        %600 = vmatmul.mubr.f32.gmra.mrb[0].mxu0 %v328
        %v601 = vpop.f32.mrb[0].mxu0
        %v602 = vadd.f32 %v413, %v601
        %v603 = vpop.f32.mrb[0].mxu0
        %v604 = vadd.f32 %v417, %v603
        %605 = vmatprep.mubr.f32.mxu0 0.0
        %606 = vmatmul.mubr.f32.gmra.mrb[0].mxu0 %v329
        %v607 = vpop.f32.mrb[0].mxu0
        %v608 = vadd.f32 %v413, %v607
        %v609 = vpop.f32.mrb[0].mxu0
        %v610 = vadd.f32 %v417, %v609
        %611 = vmatprep.mubr.f32.mxu0 0.0
        %612 = vmatmul.mubr.f32.gmra.mrb[0].mxu0 %v330
        %v613 = vpop.f32.mrb[0].mxu0
        %v614 = vadd.f32 %v413, %v613
        %v615 = vpop.f32.mrb[0].mxu0
        %v616 = vadd.f32 %v417, %v615
        %617 = vmatprep.mubr.f32.mxu0 0.0
        %618 = vmatmul.mubr.f32.gmra.mrb[0].mxu0 %v331
        %v619 = vpop.f32.mrb[0].mxu0
        %v620 = vadd.f32 %v413, %v619
        %v621 = vpop.f32.mrb[0].mxu0
        %v622 = vadd.f32 %v417, %v621
        %623 = vmatprep.mubr.f32.mxu0 0.0
        %624 = vmatmul.mubr.f32.gmra.mrb[0].mxu0 %v332
        %v625 = vpop.f32.mrb[0].mxu0
        %v626 = vadd.f32 %v413, %v625
        %v627 = vpop.f32.mrb[0].mxu0
        %v628 = vadd.f32 %v417, %v627
        %629 = vmatprep.mubr.f32.mxu0 0.0
        %630 = vmatmul.mubr.f32.gmra.mrb[0].mxu0 %v333
        %v631 = vpop.f32.mrb[0].mxu0
        %v632 = vadd.f32 %v413, %v631
        %v633 = vpop.f32.mrb[0].mxu0
        %v634 = vadd.f32 %v417, %v633
        %635 = vmatprep.mubr.f32.mxu0 0.0
        %636 = vmatmul.mubr.f32.gmra.mrb[0].mxu0 %v334
        %v637 = vpop.f32.mrb[0].mxu0
        %v638 = vadd.f32 %v413, %v637
        %v639 = vpop.f32.mrb[0].mxu0
        %v640 = vadd.f32 %v417, %v639
        %641 = vmatprep.mubr.f32.mxu0 0.0
        %642 = vmatmul.mubr.f32.gmra.mrb[0].mxu0 %v335
        %v643 = vpop.f32.mrb[0].mxu0
        %v644 = vadd.f32 %v413, %v643
        %v645 = vpop.f32.mrb[0].mxu0
        %v646 = vadd.f32 %v417, %v645
        %647 = vdwg.mxu0
        %v648 = vmul.f32 %v489, 0.5
        %v649 = vmul.f32 %v491, 0.5
        %v650 = vmul.f32 %v602, 0.5
        %v651 = vmul.f32 %v604, 0.5
        %v652 = vmul.f32 %v495, 0.5
        %v653 = vmul.f32 %v497, 0.5
        %v654 = vmul.f32 %v608, 0.5
        %v655 = vmul.f32 %v610, 0.5
        %v656 = vmul.f32 %v501, 0.5
        %v657 = vmul.f32 %v503, 0.5
        %v658 = vmul.f32 %v614, 0.5
        %v659 = vmul.f32 %v616, 0.5
        %v660 = vmul.f32 %v507, 0.5
        %v661 = vmul.f32 %v509, 0.5
        %v662 = vmul.f32 %v620, 0.5
        %v663 = vmul.f32 %v622, 0.5
        %v664 = vmul.f32 %v513, 0.5
        %v665 = vmul.f32 %v515, 0.5
        %v666 = vmul.f32 %v626, 0.5
        %v667 = vmul.f32 %v628, 0.5
        %v668 = vmul.f32 %v519, 0.5
        %v669 = vmul.f32 %v521, 0.5
        %v670 = vmul.f32 %v632, 0.5
        %v671 = vmul.f32 %v634, 0.5
        %v672 = vmul.f32 %v525, 0.5
        %v673 = vmul.f32 %v527, 0.5
        %v674 = vmul.f32 %v638, 0.5
        %v675 = vmul.f32 %v640, 0.5
        %v676 = vmul.f32 %v531, 0.5
        %v677 = vmul.f32 %v533, 0.5
        %v678 = vmul.f32 %v644, 0.5
        %v679 = vmul.f32 %v646, 0.5
        %v680 = vmul.f32 %v489, 0.044715
        %v681 = vmul.f32 %v491, 0.044715
        %v682 = vmul.f32 %v602, 0.044715
        %v683 = vmul.f32 %v604, 0.044715
        %v684 = vmul.f32 %v495, 0.044715
        %v685 = vmul.f32 %v497, 0.044715
        %v686 = vmul.f32 %v608, 0.044715
        %v687 = vmul.f32 %v610, 0.044715
        %v688 = vmul.f32 %v501, 0.044715
        %v689 = vmul.f32 %v503, 0.044715
        %v690 = vmul.f32 %v614, 0.044715
        %v691 = vmul.f32 %v616, 0.044715
        %v692 = vmul.f32 %v507, 0.044715
        %v693 = vmul.f32 %v509, 0.044715
        %v694 = vmul.f32 %v620, 0.044715
        %v695 = vmul.f32 %v622, 0.044715
        %v696 = vmul.f32 %v513, 0.044715
        %v697 = vmul.f32 %v515, 0.044715
        %v698 = vmul.f32 %v626, 0.044715
        %v699 = vmul.f32 %v628, 0.044715
        %v700 = vmul.f32 %v519, 0.044715
        %v701 = vmul.f32 %v521, 0.044715
        %v702 = vmul.f32 %v632, 0.044715
        %v703 = vmul.f32 %v634, 0.044715
        %v704 = vmul.f32 %v525, 0.044715
        %v705 = vmul.f32 %v527, 0.044715
        %v706 = vmul.f32 %v638, 0.044715
        %v707 = vmul.f32 %v640, 0.044715
        %v708 = vmul.f32 %v531, 0.044715
        %v709 = vmul.f32 %v533, 0.044715
        %v710 = vmul.f32 %v644, 0.044715
        %v711 = vmul.f32 %v646, 0.044715
        %v712 = vmul.f32 %v680, %v489
        %v713 = vmul.f32 %v681, %v491
        %v714 = vmul.f32 %v682, %v602
        %v715 = vmul.f32 %v683, %v604
        %v716 = vmul.f32 %v684, %v495
        %v717 = vmul.f32 %v685, %v497
        %v718 = vmul.f32 %v686, %v608
        %v719 = vmul.f32 %v687, %v610
        %v720 = vmul.f32 %v688, %v501
        %v721 = vmul.f32 %v689, %v503
        %v722 = vmul.f32 %v690, %v614
        %v723 = vmul.f32 %v691, %v616
        %v724 = vmul.f32 %v692, %v507
        %v725 = vmul.f32 %v693, %v509
        %v726 = vmul.f32 %v694, %v620
        %v727 = vmul.f32 %v695, %v622
        %v728 = vmul.f32 %v696, %v513
        %v729 = vmul.f32 %v697, %v515
        %v730 = vmul.f32 %v698, %v626
        %v731 = vmul.f32 %v699, %v628
        %v732 = vmul.f32 %v700, %v519
        %v733 = vmul.f32 %v701, %v521
        %v734 = vmul.f32 %v702, %v632
        %v735 = vmul.f32 %v703, %v634
        %v736 = vmul.f32 %v704, %v525
        %v737 = vmul.f32 %v705, %v527
        %v738 = vmul.f32 %v706, %v638
        %v739 = vmul.f32 %v707, %v640
        %v740 = vmul.f32 %v708, %v531
        %v741 = vmul.f32 %v709, %v533
        %v742 = vmul.f32 %v710, %v644
        %v743 = vmul.f32 %v711, %v646
        %v744 = vmul.f32 %v712, %v489
        %v745 = vmul.f32 %v713, %v491
        %v746 = vmul.f32 %v714, %v602
        %v747 = vmul.f32 %v715, %v604
        %v748 = vmul.f32 %v716, %v495
        %v749 = vmul.f32 %v717, %v497
        %v750 = vmul.f32 %v718, %v608
        %v751 = vmul.f32 %v719, %v610
        %v752 = vmul.f32 %v720, %v501
        %v753 = vmul.f32 %v721, %v503
        %v754 = vmul.f32 %v722, %v614
        %v755 = vmul.f32 %v723, %v616
        %v756 = vmul.f32 %v724, %v507
        %v757 = vmul.f32 %v725, %v509
        %v758 = vmul.f32 %v726, %v620
        %v759 = vmul.f32 %v727, %v622
        %v760 = vmul.f32 %v728, %v513
        %v761 = vmul.f32 %v729, %v515
        %v762 = vmul.f32 %v730, %v626
        %v763 = vmul.f32 %v731, %v628
        %v764 = vmul.f32 %v732, %v519
        %v765 = vmul.f32 %v733, %v521
        %v766 = vmul.f32 %v734, %v632
        %v767 = vmul.f32 %v735, %v634
        %v768 = vmul.f32 %v736, %v525
        %v769 = vmul.f32 %v737, %v527
        %v770 = vmul.f32 %v738, %v638
        %v771 = vmul.f32 %v739, %v640
        %v772 = vmul.f32 %v740, %v531
        %v773 = vmul.f32 %v741, %v533
        %v774 = vmul.f32 %v742, %v644
        %v775 = vmul.f32 %v743, %v646
        %v776 = vadd.f32 %v489, %v744
        %v777 = vadd.f32 %v491, %v745
        %v778 = vadd.f32 %v602, %v746
        %v779 = vadd.f32 %v604, %v747
        %v780 = vadd.f32 %v495, %v748
        %v781 = vadd.f32 %v497, %v749
        %v782 = vadd.f32 %v608, %v750
        %v783 = vadd.f32 %v610, %v751
        %v784 = vadd.f32 %v501, %v752
        %v785 = vadd.f32 %v503, %v753
        %v786 = vadd.f32 %v614, %v754
        %v787 = vadd.f32 %v616, %v755
        %v788 = vadd.f32 %v507, %v756
        %v789 = vadd.f32 %v509, %v757
        %v790 = vadd.f32 %v620, %v758
        %v791 = vadd.f32 %v622, %v759
        %v792 = vadd.f32 %v513, %v760
        %v793 = vadd.f32 %v515, %v761
        %v794 = vadd.f32 %v626, %v762
        %v795 = vadd.f32 %v628, %v763
        %v796 = vadd.f32 %v519, %v764
        %v797 = vadd.f32 %v521, %v765
        %v798 = vadd.f32 %v632, %v766
        %v799 = vadd.f32 %v634, %v767
        %v800 = vadd.f32 %v525, %v768
        %v801 = vadd.f32 %v527, %v769
        %v802 = vadd.f32 %v638, %v770
        %v803 = vadd.f32 %v640, %v771
        %v804 = vadd.f32 %v531, %v772
        %v805 = vadd.f32 %v533, %v773
        %v806 = vadd.f32 %v644, %v774
        %v807 = vadd.f32 %v646, %v775
        %v808 = vmul.f32 %v776, 0.7978846
        %v809 = vmul.f32 %v777, 0.7978846
        %v810 = vmul.f32 %v778, 0.7978846
        %v811 = vmul.f32 %v779, 0.7978846
        %v812 = vmul.f32 %v780, 0.7978846
        %v813 = vmul.f32 %v781, 0.7978846
        %v814 = vmul.f32 %v782, 0.7978846
        %v815 = vmul.f32 %v783, 0.7978846
        %v816 = vmul.f32 %v784, 0.7978846
        %v817 = vmul.f32 %v785, 0.7978846
        %v818 = vmul.f32 %v786, 0.7978846
        %v819 = vmul.f32 %v787, 0.7978846
        %v820 = vmul.f32 %v788, 0.7978846
        %v821 = vmul.f32 %v789, 0.7978846
        %v822 = vmul.f32 %v790, 0.7978846
        %v823 = vmul.f32 %v791, 0.7978846
        %v824 = vmul.f32 %v792, 0.7978846
        %v825 = vmul.f32 %v793, 0.7978846
        %v826 = vmul.f32 %v794, 0.7978846
        %v827 = vmul.f32 %v795, 0.7978846
        %v828 = vmul.f32 %v796, 0.7978846
        %v829 = vmul.f32 %v797, 0.7978846
        %v830 = vmul.f32 %v798, 0.7978846
        %v831 = vmul.f32 %v799, 0.7978846
        %v832 = vmul.f32 %v800, 0.7978846
        %v833 = vmul.f32 %v801, 0.7978846
        %v834 = vmul.f32 %v802, 0.7978846
        %v835 = vmul.f32 %v803, 0.7978846
        %v836 = vmul.f32 %v804, 0.7978846
        %v837 = vmul.f32 %v805, 0.7978846
        %v838 = vmul.f32 %v806, 0.7978846
        %v839 = vmul.f32 %v807, 0.7978846
        %v840 = vtanh.pop %v808
        %v841 = vtanh.pop %v809
        %v842 = vtanh.pop %v810
        %v843 = vtanh.pop %v811
        %v844 = vtanh.pop %v812
        %v845 = vtanh.pop %v813
        %v846 = vtanh.pop %v814
        %v847 = vtanh.pop %v815
        %v848 = vtanh.pop %v816
        %v849 = vtanh.pop %v817
        %v850 = vtanh.pop %v818
        %v851 = vtanh.pop %v819
        %v852 = vtanh.pop %v820
        %v853 = vtanh.pop %v821
        %v854 = vtanh.pop %v822
        %v855 = vtanh.pop %v823
        %v856 = vtanh.pop %v824
        %v857 = vtanh.pop %v825
        %v858 = vtanh.pop %v826
        %v859 = vtanh.pop %v827
        %v860 = vtanh.pop %v828
        %v861 = vtanh.pop %v829
        %v862 = vtanh.pop %v830
        %v863 = vtanh.pop %v831
        %v864 = vtanh.pop %v832
        %v865 = vtanh.pop %v833
        %v866 = vtanh.pop %v834
        %v867 = vtanh.pop %v835
        %v868 = vtanh.pop %v836
        %v869 = vtanh.pop %v837
        %v870 = vtanh.pop %v838
        %v871 = vtanh.pop %v839
        %v872 = vadd.f32 %v840, 1.0
        %v873 = vadd.f32 %v841, 1.0
        %v874 = vadd.f32 %v842, 1.0
        %v875 = vadd.f32 %v843, 1.0
        %v876 = vadd.f32 %v844, 1.0
        %v877 = vadd.f32 %v845, 1.0
        %v878 = vadd.f32 %v846, 1.0
        %v879 = vadd.f32 %v847, 1.0
        %v880 = vadd.f32 %v848, 1.0
        %v881 = vadd.f32 %v849, 1.0
        %v882 = vadd.f32 %v850, 1.0
        %v883 = vadd.f32 %v851, 1.0
        %v884 = vadd.f32 %v852, 1.0
        %v885 = vadd.f32 %v853, 1.0
        %v886 = vadd.f32 %v854, 1.0
        %v887 = vadd.f32 %v855, 1.0
        %v888 = vadd.f32 %v856, 1.0
        %v889 = vadd.f32 %v857, 1.0
        %v890 = vadd.f32 %v858, 1.0
        %v891 = vadd.f32 %v859, 1.0
        %v892 = vadd.f32 %v860, 1.0
        %v893 = vadd.f32 %v861, 1.0
        %v894 = vadd.f32 %v862, 1.0
        %v895 = vadd.f32 %v863, 1.0
        %v896 = vadd.f32 %v864, 1.0
        %v897 = vadd.f32 %v865, 1.0
        %v898 = vadd.f32 %v866, 1.0
        %v899 = vadd.f32 %v867, 1.0
        %v900 = vadd.f32 %v868, 1.0
        %v901 = vadd.f32 %v869, 1.0
        %v902 = vadd.f32 %v870, 1.0
        %v903 = vadd.f32 %v871, 1.0
        %v904 = vmul.f32 %v648, %v872
        %v905 = vmul.f32 %v649, %v873
        %v906 = vmul.f32 %v650, %v874
        %v907 = vmul.f32 %v651, %v875
        %v908 = vmul.f32 %v652, %v876
        %v909 = vmul.f32 %v653, %v877
        %v910 = vmul.f32 %v654, %v878
        %v911 = vmul.f32 %v655, %v879
        %v912 = vmul.f32 %v656, %v880
        %v913 = vmul.f32 %v657, %v881
        %v914 = vmul.f32 %v658, %v882
        %v915 = vmul.f32 %v659, %v883
        %v916 = vmul.f32 %v660, %v884
        %v917 = vmul.f32 %v661, %v885
        %v918 = vmul.f32 %v662, %v886
        %v919 = vmul.f32 %v663, %v887
        %v920 = vmul.f32 %v664, %v888
        %v921 = vmul.f32 %v665, %v889
        %v922 = vmul.f32 %v666, %v890
        %v923 = vmul.f32 %v667, %v891
        %v924 = vmul.f32 %v668, %v892
        %v925 = vmul.f32 %v669, %v893
        %v926 = vmul.f32 %v670, %v894
        %v927 = vmul.f32 %v671, %v895
        %v928 = vmul.f32 %v672, %v896
        %v929 = vmul.f32 %v673, %v897
        %v930 = vmul.f32 %v674, %v898
        %v931 = vmul.f32 %v675, %v899
        %v932 = vmul.f32 %v676, %v900
        %v933 = vmul.f32 %v677, %v901
        %v934 = vmul.f32 %v678, %v902
        %v935 = vmul.f32 %v679, %v903
        %v936 = vld [vmem:[#allocation7] sm:$0xff]
        %v937 = vld [vmem:[#allocation7 + $0x8] sm:$0xff]
        %v938 = vld [vmem:[#allocation7 + $0x10] sm:$0xff]
        %v939 = vld [vmem:[#allocation7 + $0x18] sm:$0xff]
        %v940 = vld [vmem:[#allocation7 + $0x20] sm:$0xff]
        %v941 = vld [vmem:[#allocation7 + $0x28] sm:$0xff]
        %v942 = vld [vmem:[#allocation7 + $0x30] sm:$0xff]
        %v943 = vld [vmem:[#allocation7 + $0x38] sm:$0xff]
        %v944 = vld [vmem:[#allocation7 + $0x40] sm:$0xff]
        %v945 = vld [vmem:[#allocation7 + $0x48] sm:$0xff]
        %v946 = vld [vmem:[#allocation7 + $0x50] sm:$0xff]
        %v947 = vld [vmem:[#allocation7 + $0x58] sm:$0xff]
        %v948 = vld [vmem:[#allocation7 + $0x60] sm:$0xff]
        %v949 = vld [vmem:[#allocation7 + $0x68] sm:$0xff]
        %v950 = vld [vmem:[#allocation7 + $0x70] sm:$0xff]
        %v951 = vld [vmem:[#allocation7 + $0x78] sm:$0xff]
        %v952 = vld [vmem:[#allocation7 + $0x80] sm:$0xff]
        %v953 = vld [vmem:[#allocation7 + $0x88] sm:$0xff]
        %v954 = vld [vmem:[#allocation7 + $0x90] sm:$0xff]
        %v955 = vld [vmem:[#allocation7 + $0x98] sm:$0xff]
        %v956 = vld [vmem:[#allocation7 + $0xa0] sm:$0xff]
        %v957 = vld [vmem:[#allocation7 + $0xa8] sm:$0xff]
        %v958 = vld [vmem:[#allocation7 + $0xb0] sm:$0xff]
        %v959 = vld [vmem:[#allocation7 + $0xb8] sm:$0xff]
        %v960 = vld [vmem:[#allocation7 + $0xc0] sm:$0xff]
        %v961 = vld [vmem:[#allocation7 + $0xc8] sm:$0xff]
        %v962 = vld [vmem:[#allocation7 + $0xd0] sm:$0xff]
        %v963 = vld [vmem:[#allocation7 + $0xd8] sm:$0xff]
        %v964 = vld [vmem:[#allocation7 + $0xe0] sm:$0xff]
        %v965 = vld [vmem:[#allocation7 + $0xe8] sm:$0xff]
        %v966 = vld [vmem:[#allocation7 + $0xf0] sm:$0xff]
        %v967 = vld [vmem:[#allocation7 + $0xf8] sm:$0xff]
        %v968 = vld [vmem:[#allocation7 + $0x100] sm:$0xff]
        %v969 = vld [vmem:[#allocation7 + $0x108] sm:$0xff]
        %v970 = vld [vmem:[#allocation7 + $0x110] sm:$0xff]
        %v971 = vld [vmem:[#allocation7 + $0x118] sm:$0xff]
        %v972 = vld [vmem:[#allocation7 + $0x120] sm:$0xff]
        %v973 = vld [vmem:[#allocation7 + $0x128] sm:$0xff]
        %v974 = vld [vmem:[#allocation7 + $0x130] sm:$0xff]
        %v975 = vld [vmem:[#allocation7 + $0x138] sm:$0xff]
        %v976 = vld [vmem:[#allocation7 + $0x140] sm:$0xff]
        %v977 = vld [vmem:[#allocation7 + $0x148] sm:$0xff]
        %v978 = vld [vmem:[#allocation7 + $0x150] sm:$0xff]
        %v979 = vld [vmem:[#allocation7 + $0x158] sm:$0xff]
        %v980 = vld [vmem:[#allocation7 + $0x160] sm:$0xff]
        %v981 = vld [vmem:[#allocation7 + $0x168] sm:$0xff]
        %v982 = vld [vmem:[#allocation7 + $0x170] sm:$0xff]
        %v983 = vld [vmem:[#allocation7 + $0x178] sm:$0xff]
        %v984 = vld [vmem:[#allocation7 + $0x180] sm:$0xff]
        %v985 = vld [vmem:[#allocation7 + $0x188] sm:$0xff]
        %v986 = vld [vmem:[#allocation7 + $0x190] sm:$0xff]
        %v987 = vld [vmem:[#allocation7 + $0x198] sm:$0xff]
        %v988 = vld [vmem:[#allocation7 + $0x1a0] sm:$0xff]
        %v989 = vld [vmem:[#allocation7 + $0x1a8] sm:$0xff]
        %v990 = vld [vmem:[#allocation7 + $0x1b0] sm:$0xff]
        %v991 = vld [vmem:[#allocation7 + $0x1b8] sm:$0xff]
        %v992 = vld [vmem:[#allocation7 + $0x1c0] sm:$0xff]
        %v993 = vld [vmem:[#allocation7 + $0x1c8] sm:$0xff]
        %v994 = vld [vmem:[#allocation7 + $0x1d0] sm:$0xff]
        %v995 = vld [vmem:[#allocation7 + $0x1d8] sm:$0xff]
        %v996 = vld [vmem:[#allocation7 + $0x1e0] sm:$0xff]
        %v997 = vld [vmem:[#allocation7 + $0x1e8] sm:$0xff]
        %v998 = vld [vmem:[#allocation7 + $0x1f0] sm:$0xff]
        %v999 = vld [vmem:[#allocation7 + $0x1f8] sm:$0xff]
        %v1000 = vld [vmem:[%s6] sm:$0x1]
        %v1002 = vlaneseq
        %v1003 = vshrl.u32 %v1002, 7
        %v1004 = vsub.s32 0, %v1003
        %v1005 = vrot.slane %v1000, %v1004
        %1007 = vmatprep.subr.mxu0 0.0
        %1008 = vmatpush1.msra.mxu0 %v936
        %1009 = vmatprep.subr.mxu0 0.0
        %1010 = vmatpush1.msra.mxu0 %v937
        %1011 = vmatprep.subr.mxu0 0.0
        %1012 = vmatpush1.msra.mxu0 %v938
        %1013 = vmatprep.subr.mxu0 0.0
        %1014 = vmatpush1.msra.mxu0 %v939
        %1015 = vmatprep.subr.mxu0 0.0
        %1016 = vmatpush1.msra.mxu0 %v940
        %1017 = vmatprep.subr.mxu0 0.0
        %1018 = vmatpush1.msra.mxu0 %v941
        %1019 = vmatprep.subr.mxu0 0.0
        %1020 = vmatpush1.msra.mxu0 %v942
        %1021 = vmatprep.subr.mxu0 0.0
        %1022 = vmatpush1.msra.mxu0 %v943
        %1023 = vmatprep.subr.mxu0 0.0
        %1024 = vmatpush1.msra.mxu0 %v944
        %1025 = vmatprep.subr.mxu0 0.0
        %1026 = vmatpush1.msra.mxu0 %v945
        %1027 = vmatprep.subr.mxu0 0.0
        %1028 = vmatpush1.msra.mxu0 %v946
        %1029 = vmatprep.subr.mxu0 0.0
        %1030 = vmatpush1.msra.mxu0 %v947
        %1031 = vmatprep.subr.mxu0 0.0
        %1032 = vmatpush1.msra.mxu0 %v948
        %1033 = vmatprep.subr.mxu0 0.0
        %1034 = vmatpush1.msra.mxu0 %v949
        %1035 = vmatprep.subr.mxu0 0.0
        %1036 = vmatpush1.msra.mxu0 %v950
        %1037 = vmatprep.subr.mxu0 0.0
        %1038 = vmatpush1.msra.mxu0 %v951
        %1039 = vmatprep.subr.mxu0 0.0
        %1040 = vmatpush1.msra.mxu0 %v952
        %1041 = vmatprep.subr.mxu0 0.0
        %1042 = vmatpush1.msra.mxu0 %v953
        %1043 = vmatprep.subr.mxu0 0.0
        %1044 = vmatpush1.msra.mxu0 %v954
        %1045 = vmatprep.subr.mxu0 0.0
        %1046 = vmatpush1.msra.mxu0 %v955
        %1047 = vmatprep.subr.mxu0 0.0
        %1048 = vmatpush1.msra.mxu0 %v956
        %1049 = vmatprep.subr.mxu0 0.0
        %1050 = vmatpush1.msra.mxu0 %v957
        %1051 = vmatprep.subr.mxu0 0.0
        %1052 = vmatpush1.msra.mxu0 %v958
        %1053 = vmatprep.subr.mxu0 0.0
        %1054 = vmatpush1.msra.mxu0 %v959
        %1055 = vmatprep.subr.mxu0 0.0
        %1056 = vmatpush1.msra.mxu0 %v960
        %1057 = vmatprep.subr.mxu0 0.0
        %1058 = vmatpush1.msra.mxu0 %v961
        %1059 = vmatprep.subr.mxu0 0.0
        %1060 = vmatpush1.msra.mxu0 %v962
        %1061 = vmatprep.subr.mxu0 0.0
        %1062 = vmatpush1.msra.mxu0 %v963
        %1063 = vmatprep.subr.mxu0 0.0
        %1064 = vmatpush1.msra.mxu0 %v964
        %1065 = vmatprep.subr.mxu0 0.0
        %1066 = vmatpush1.msra.mxu0 %v965
        %1067 = vmatprep.subr.mxu0 0.0
        %1068 = vmatpush1.msra.mxu0 %v966
        %1069 = vmatprep.subr.mxu0 0.0
        %1070 = vmatpush1.msra.mxu0 %v967
        %1071 = vmatprep.mubr.f32.mxu0 %v905
        %1072 = vmatmul.mubr.f32.gmra.mrb[0].mxu0 %v904
        %v1073 = vpop.f32.mrb[0].mxu0
        %v1074 = vadd.f32 %v1005, %v1073
        %v1075 = vpop.f32.mrb[0].mxu0
        %1076 = vmatprep.mubr.f32.mxu0 %v909
        %1077 = vmatmul.mubr.f32.gmra.mrb[0].mxu0 %v908
        %v1078 = vpop.f32.mrb[0].mxu0
        %v1079 = vadd.f32 %v1005, %v1078
        %v1080 = vpop.f32.mrb[0].mxu0
        %1081 = vmatprep.mubr.f32.mxu0 %v913
        %1082 = vmatmul.mubr.f32.gmra.mrb[0].mxu0 %v912
        %v1083 = vpop.f32.mrb[0].mxu0
        %v1084 = vadd.f32 %v1005, %v1083
        %v1085 = vpop.f32.mrb[0].mxu0
        %1086 = vmatprep.mubr.f32.mxu0 %v917
        %1087 = vmatmul.mubr.f32.gmra.mrb[0].mxu0 %v916
        %v1088 = vpop.f32.mrb[0].mxu0
        %v1089 = vadd.f32 %v1005, %v1088
        %v1090 = vpop.f32.mrb[0].mxu0
        %1091 = vmatprep.mubr.f32.mxu0 %v921
        %1092 = vmatmul.mubr.f32.gmra.mrb[0].mxu0 %v920
        %v1093 = vpop.f32.mrb[0].mxu0
        %v1094 = vadd.f32 %v1005, %v1093
        %v1095 = vpop.f32.mrb[0].mxu0
        %1096 = vmatprep.mubr.f32.mxu0 %v925
        %1097 = vmatmul.mubr.f32.gmra.mrb[0].mxu0 %v924
        %v1098 = vpop.f32.mrb[0].mxu0
        %v1099 = vadd.f32 %v1005, %v1098
        %v1100 = vpop.f32.mrb[0].mxu0
        %1101 = vmatprep.mubr.f32.mxu0 %v929
        %1102 = vmatmul.mubr.f32.gmra.mrb[0].mxu0 %v928
        %v1103 = vpop.f32.mrb[0].mxu0
        %v1104 = vadd.f32 %v1005, %v1103
        %v1105 = vpop.f32.mrb[0].mxu0
        %1106 = vmatprep.mubr.f32.mxu0 %v933
        %1107 = vmatmul.mubr.f32.gmra.mrb[0].mxu0 %v932
        %v1108 = vpop.f32.mrb[0].mxu0
        %v1109 = vadd.f32 %v1005, %v1108
        %v1110 = vpop.f32.mrb[0].mxu0
        %1111 = vdwg.mxu0
        %1112 = vmatprep.subr.mxu0 0.0
        %1113 = vmatpush1.msra.mxu0 %v968
        %1114 = vmatprep.subr.mxu0 0.0
        %1115 = vmatpush1.msra.mxu0 %v969
        %1116 = vmatprep.subr.mxu0 0.0
        %1117 = vmatpush1.msra.mxu0 %v970
        %1118 = vmatprep.subr.mxu0 0.0
        %1119 = vmatpush1.msra.mxu0 %v971
        %1120 = vmatprep.subr.mxu0 0.0
        %1121 = vmatpush1.msra.mxu0 %v972
        %1122 = vmatprep.subr.mxu0 0.0
        %1123 = vmatpush1.msra.mxu0 %v973
        %1124 = vmatprep.subr.mxu0 0.0
        %1125 = vmatpush1.msra.mxu0 %v974
        %1126 = vmatprep.subr.mxu0 0.0
        %1127 = vmatpush1.msra.mxu0 %v975
        %1128 = vmatprep.subr.mxu0 0.0
        %1129 = vmatpush1.msra.mxu0 %v976
        %1130 = vmatprep.subr.mxu0 0.0
        %1131 = vmatpush1.msra.mxu0 %v977
        %1132 = vmatprep.subr.mxu0 0.0
        %1133 = vmatpush1.msra.mxu0 %v978
        %1134 = vmatprep.subr.mxu0 0.0
        %1135 = vmatpush1.msra.mxu0 %v979
        %1136 = vmatprep.subr.mxu0 0.0
        %1137 = vmatpush1.msra.mxu0 %v980
        %1138 = vmatprep.subr.mxu0 0.0
        %1139 = vmatpush1.msra.mxu0 %v981
        %1140 = vmatprep.subr.mxu0 0.0
        %1141 = vmatpush1.msra.mxu0 %v982
        %1142 = vmatprep.subr.mxu0 0.0
        %1143 = vmatpush1.msra.mxu0 %v983
        %1144 = vmatprep.subr.mxu0 0.0
        %1145 = vmatpush1.msra.mxu0 %v984
        %1146 = vmatprep.subr.mxu0 0.0
        %1147 = vmatpush1.msra.mxu0 %v985
        %1148 = vmatprep.subr.mxu0 0.0
        %1149 = vmatpush1.msra.mxu0 %v986
        %1150 = vmatprep.subr.mxu0 0.0
        %1151 = vmatpush1.msra.mxu0 %v987
        %1152 = vmatprep.subr.mxu0 0.0
        %1153 = vmatpush1.msra.mxu0 %v988
        %1154 = vmatprep.subr.mxu0 0.0
        %1155 = vmatpush1.msra.mxu0 %v989
        %1156 = vmatprep.subr.mxu0 0.0
        %1157 = vmatpush1.msra.mxu0 %v990
        %1158 = vmatprep.subr.mxu0 0.0
        %1159 = vmatpush1.msra.mxu0 %v991
        %1160 = vmatprep.subr.mxu0 0.0
        %1161 = vmatpush1.msra.mxu0 %v992
        %1162 = vmatprep.subr.mxu0 0.0
        %1163 = vmatpush1.msra.mxu0 %v993
        %1164 = vmatprep.subr.mxu0 0.0
        %1165 = vmatpush1.msra.mxu0 %v994
        %1166 = vmatprep.subr.mxu0 0.0
        %1167 = vmatpush1.msra.mxu0 %v995
        %1168 = vmatprep.subr.mxu0 0.0
        %1169 = vmatpush1.msra.mxu0 %v996
        %1170 = vmatprep.subr.mxu0 0.0
        %1171 = vmatpush1.msra.mxu0 %v997
        %1172 = vmatprep.subr.mxu0 0.0
        %1173 = vmatpush1.msra.mxu0 %v998
        %1174 = vmatprep.subr.mxu0 0.0
        %1175 = vmatpush1.msra.mxu0 %v999
        %1176 = vmatprep.mubr.f32.mxu0 %v907
        %1177 = vmatmul.mubr.f32.gmra.mrb[0].mxu0 %v906
        %v1178 = vpop.f32.mrb[0].mxu0
        %v1179 = vadd.f32 %v1074, %v1178
        %v1180 = vpop.f32.mrb[0].mxu0
        %1181 = vmatprep.mubr.f32.mxu0 %v911
        %1182 = vmatmul.mubr.f32.gmra.mrb[0].mxu0 %v910
        %v1183 = vpop.f32.mrb[0].mxu0
        %v1184 = vadd.f32 %v1079, %v1183
        %v1185 = vpop.f32.mrb[0].mxu0
        %1186 = vmatprep.mubr.f32.mxu0 %v915
        %1187 = vmatmul.mubr.f32.gmra.mrb[0].mxu0 %v914
        %v1188 = vpop.f32.mrb[0].mxu0
        %v1189 = vadd.f32 %v1084, %v1188
        %v1190 = vpop.f32.mrb[0].mxu0
        %1191 = vmatprep.mubr.f32.mxu0 %v919
        %1192 = vmatmul.mubr.f32.gmra.mrb[0].mxu0 %v918
        %v1193 = vpop.f32.mrb[0].mxu0
        %v1194 = vadd.f32 %v1089, %v1193
        %v1195 = vpop.f32.mrb[0].mxu0
        %1196 = vmatprep.mubr.f32.mxu0 %v923
        %1197 = vmatmul.mubr.f32.gmra.mrb[0].mxu0 %v922
        %v1198 = vpop.f32.mrb[0].mxu0
        %v1199 = vadd.f32 %v1094, %v1198
        %v1200 = vpop.f32.mrb[0].mxu0
        %1201 = vmatprep.mubr.f32.mxu0 %v927
        %1202 = vmatmul.mubr.f32.gmra.mrb[0].mxu0 %v926
        %v1203 = vpop.f32.mrb[0].mxu0
        %v1204 = vadd.f32 %v1099, %v1203
        %v1205 = vpop.f32.mrb[0].mxu0
        %1206 = vmatprep.mubr.f32.mxu0 %v931
        %1207 = vmatmul.mubr.f32.gmra.mrb[0].mxu0 %v930
        %v1208 = vpop.f32.mrb[0].mxu0
        %v1209 = vadd.f32 %v1104, %v1208
        %v1210 = vpop.f32.mrb[0].mxu0
        %1211 = vmatprep.mubr.f32.mxu0 %v935
        %1212 = vmatmul.mubr.f32.gmra.mrb[0].mxu0 %v934
        %v1213 = vpop.f32.mrb[0].mxu0
        %v1214 = vadd.f32 %v1109, %v1213
        %v1215 = vpop.f32.mrb[0].mxu0
        %1216 = vdwg.mxu0
        %1217 = vst [vmem:[%s325] sm:$0xff] %v1179
        %1218 = vst [vmem:[%s325 + $0x8] sm:$0xff] %v1184
        %1219 = vst [vmem:[%s325 + $0x10] sm:$0xff] %v1189
        %1220 = vst [vmem:[%s325 + $0x18] sm:$0xff] %v1194
        %1221 = vst [vmem:[%s325 + $0x20] sm:$0xff] %v1199
        %1222 = vst [vmem:[%s325 + $0x28] sm:$0xff] %v1204
        %1223 = vst [vmem:[%s325 + $0x30] sm:$0xff] %v1209
        %1224 = vst [vmem:[%s325 + $0x38] sm:$0xff] %v1214
        %s1225 = sand.u32 %s185, 1
        %s1226 = scalar_lea.sflag [#allocation4], %s1225
        %s1227 = sand.u32 %s185, 1
        %s1228 = smul.addr %s1227, 64
        %s1229 = scalar_lea.vmem [#allocation8], %s1228
        // Predicated region
        $region61: #{tpu_custom_call.1} parent=47 // pred_check
          %p1230 = pneg %p195
        $region62: #{tpu_custom_call.1} parent=47 // pred_check_branch
          %1232 = sbr.rel (%p1230) target = $region64
        $region63: #{tpu_custom_call.1} parent=47 // pred_region
          %s1233 = smul.u32 8, %s25
          %s1235 = ssub.s32 1024, 1024
          %1236 = vsyncadd %s1226, %s1235
          %s1237 = smul.addr %s1233, 128
          %s1238 = scalar_lea.hbm %s7, %s1237
          %s1239 = sshll.u32 %s1229, 4
          %s1240 = int_to_ptr.vmem [resolvable:$true] %s1239
          %1245 = dma.vmem_to_hbm [thread:$0]  %s1240, 1024, %s1238, %s1226, 128, 128, 8
        $region64: #{tpu_custom_call.1} parent=47 // pred_fallthru
          _
      $region48: #{tpu_custom_call.1} parent=5 // pred_fallthru
        _
      %p1246 = scmp.le.s32.totalorder 2, %s20
      // Predicated region
      $region65: #{tpu_custom_call.1} parent=5 // pred_check
        %p1247 = pneg %p1246
      $region66: #{tpu_custom_call.1} parent=5 // pred_check_branch
        %1249 = sbr.rel (%p1247) target = $region68
      $region67: #{tpu_custom_call.1} parent=5 // pred_region
        %s1250 = ssub.s32 %s20, 2
        // Predicated region
        $region69: #{tpu_custom_call.1} parent=67 // pred_check
          %p1251 = pneg %p201
        $region70: #{tpu_custom_call.1} parent=67 // pred_check_branch
          %1253 = sbr.rel (%p1251) target = $region72
        $region71: #{tpu_custom_call.1} parent=67 // pred_region
          %s1254 = sand.u32 %s186, 1
          %s1255 = scalar_lea.sflag [#allocation4], %s1254
          %s1256 = sand.u32 %s186, 1
          %s1257 = smul.addr %s1256, 64
          %s1258 = scalar_lea.vmem [#allocation8], %s1257
          %1259 = dma.done %s1255, 1024
        $region72: #{tpu_custom_call.1} parent=67 // pred_fallthru
          _
      $region68: #{tpu_custom_call.1} parent=5 // pred_fallthru
        _
    $region6: #{tpu_custom_call.1} parent=1 // loop_footer
      %s24 = sadd.s32 1, %s20
    $region7: #{tpu_custom_call.1} parent=1 // loop_footer_branch
      %19 = sbr.rel target = $region3
    $region8: #{tpu_custom_call.1} parent=1 // loop_exit
      _
    %1260 = vsyncpa [#allocation3], 1
    %s1261 = scalar_lea.sflag [#allocation3], 1
    %1262 = vsyncpa %s1261, 1
    %1263 = vsyncpa [#allocation6], 1
    %1264 = vsyncpa [#allocation4], 1
    %s1265 = scalar_lea.sflag [#allocation4], 1
    %1266 = vsyncpa %s1265, 1

</llo_original>
